<compile_context>
chip_gen: v7x
topology: tpu7x:2x2x1
jax: 0.10.0
libtpu: 0.0.40
codegen_flags: <defaults>
</compile_context>

<pallas_src>
import functools
import math

import jax
import jax.numpy as jnp
import numpy as np
from jax.experimental import pallas as pl
from jax.experimental.pallas import tpu as pltpu


def _round_up(x: int, m: int) -> int:
    return ((x + m - 1) // m) * m


def _integer_pow(base, exponent: int):
    """x**e for integer e>0 via binary exponentiation (no transcendentals)."""
    acc = None
    cur = base
    e = exponent
    while e:
        if e & 1:
            acc = cur if acc is None else acc * cur
        e >>= 1
        if e:
            cur = cur * cur
    return acc


def _theta_kernel(x_ref, cos_s_ref, sin_s_ref, o_ref, *, zeta: float, norm: float):
    """
    x_ref     : (1, tile_n)        f32   0.95-unscaled cos(theta) values
    cos_s_ref : (n_theta, 1)       f32   cos(theta_s)
    sin_s_ref : (n_theta, 1)       f32   sin(theta_s)
    o_ref     : (n_theta, tile_n)  f32   2^(1-zeta) * (1 + cos(theta - theta_s))^zeta
    """
    c = x_ref[...]                                   # (1, tile_n)
    a = 0.95 * c                                     # cos(theta), |a| <= 0.95
    s = jnp.sqrt(jnp.maximum(1.0 - a * a, 0.0))      # sin(theta), theta in [0, pi]

    # cos(theta - theta_s) = cos(theta)cos(theta_s) + sin(theta)sin(theta_s)
    # (1, tile_n) broadcast against (n_theta, 1) -> (n_theta, tile_n)
    cos_diff = a * cos_s_ref[...] + s * sin_s_ref[...]
    base = jnp.maximum(1.0 + cos_diff, 0.0)          # clamp guards pow at ~0

    if float(zeta).is_integer() and 0 < zeta <= 64:
        powed = _integer_pow(base, int(zeta))        # VPU only, frees the EUP slot
    else:
        powed = jnp.power(base, jnp.float32(zeta))

    o_ref[...] = (norm * powed).astype(o_ref.dtype)


def theta_distribution(cos_theta, offset_theta, zeta: float = 8.0,
                       *, tile_n: int = 8192, out_dtype=jnp.float32):
    """
    cos_theta    : (B, At, Nbr) array
    offset_theta : (n_theta,)   array (trainable parameter in the torch module)
    returns      : (B, At, Nbr, n_theta)
    """
    B, At, Nbr = cos_theta.shape
    n_theta = int(offset_theta.shape[0])
    N = B * At * Nbr

    # Lane-dense tile sizing: multiple of 128, no larger than needed.
    tile_n = max(128, min(_round_up(tile_n, 128), _round_up(N, 128)))
    n_pad = _round_up(N, tile_n)

    flat = cos_theta.reshape(-1).astype(jnp.float32)
    if n_pad != N:
        flat = jnp.pad(flat, (0, n_pad - N))
    x2d = flat.reshape(1, n_pad)

    offs = offset_theta.astype(jnp.float32)
    cos_s = jnp.cos(offs).reshape(n_theta, 1)
    sin_s = jnp.sin(offs).reshape(n_theta, 1)

    norm = float(2.0 ** (1.0 - float(zeta)))
    kernel = functools.partial(_theta_kernel, zeta=float(zeta), norm=norm)
    grid = (n_pad // tile_n,)

    out = pl.pallas_call(
        kernel,
        out_shape=jax.ShapeDtypeStruct((n_theta, n_pad), out_dtype),
        grid=grid,
        in_specs=[
            pl.BlockSpec((1, tile_n), lambda i: (0, i)),        # cos_theta row chunk
            pl.BlockSpec((n_theta, 1), lambda i: (0, 0)),       # cos(theta_s), whole
            pl.BlockSpec((n_theta, 1), lambda i: (0, 0)),       # sin(theta_s), whole
        ],
        out_specs=pl.BlockSpec((n_theta, tile_n), lambda i: (0, i)),
        compiler_params=pltpu.CompilerParams(
            dimension_semantics=("parallel",),
            vmem_limit_bytes=32 * 1024 * 1024,
        ),
    )(x2d, cos_s, sin_s)

    # (n_theta, n_pad) -> slice pad -> (N, n_theta) -> (B, At, Nbr, n_theta)
    out = out[:, :N].T.reshape(B, At, Nbr, n_theta)
    return out


def _reference(cos_theta, offset_theta, zeta):
    """Pure-JAX transcription of the PyTorch forward."""
    diff = (jnp.arccos(0.95 * cos_theta)[..., None]
            - offset_theta[None, None, None, :])
    return (2.0 ** (1.0 - zeta)) * jnp.power(1.0 + jnp.cos(diff), zeta)


if __name__ == "__main__":
    B, At, Nbr, n_theta = 2, 8, 16, 10
    zeta = 8.0

    key = jax.random.PRNGKey(0)
    cos_theta = jax.random.uniform(key, (B, At, Nbr), jnp.float32,
                                   minval=-1.0, maxval=1.0)
    offset_theta = jnp.asarray(
        np.linspace(0.0, 2.0 * math.pi, endpoint=False, num=n_theta),
        dtype=jnp.float32)

    out = theta_distribution(cos_theta, offset_theta, zeta)
    out = jax.block_until_ready(out)

    ref = _reference(cos_theta, offset_theta, zeta)
    assert out.shape == (B, At, Nbr, n_theta), out.shape
    np.testing.assert_allclose(np.asarray(out), np.asarray(ref),
                               rtol=1e-4, atol=1e-4)
    print("KERNEL_OK")
</pallas_src>

<mosaic_0001>
module attributes {stable_mosaic.version = 11 : i64} {
  func.func @_theta_kernel(%arg0: i32, %arg1: memref<1x256xf32, #tpu.memory_space<vmem>>, %arg2: memref<10x1xf32, #tpu.memory_space<vmem>>, %arg3: memref<10x1xf32, #tpu.memory_space<vmem>>, %arg4: memref<10x256xf32, #tpu.memory_space<vmem>>) attributes {dimension_semantics = [#tpu.dimension_semantics<parallel>], iteration_bounds = array<i64: 1>, scalar_prefetch = 0 : i64, scratch_operands = 0 : i64, tpu.core_type = #tpu.core_type<tc>, window_params = [{transform_indices = @transform_0, window_bounds = array<i64: 1, 256>}, {pipeline_mode = #tpu.pipeline_mode<synchronous>, transform_indices = @transform_1, window_bounds = array<i64: 10, 1>}, {pipeline_mode = #tpu.pipeline_mode<synchronous>, transform_indices = @transform_2, window_bounds = array<i64: 10, 1>}, {transform_indices = @transform_3, window_bounds = array<i64: 10, 256>}]} {
    %c0 = arith.constant 0 : index
    %c0_0 = arith.constant 0 : index
    %0 = vector.load %arg1[%c0, %c0_0] : memref<1x256xf32, #tpu.memory_space<vmem>>, vector<1x256xf32>
    %cst = arith.constant 0.949999988 : f32
    %1 = vector.broadcast %cst : f32 to vector<1x256xf32>
    %2 = arith.mulf %1, %0 : vector<1x256xf32>
    %3 = arith.mulf %2, %2 : vector<1x256xf32>
    %cst_1 = arith.constant 1.000000e+00 : f32
    %4 = vector.broadcast %cst_1 : f32 to vector<1x256xf32>
    %5 = arith.subf %4, %3 : vector<1x256xf32>
    %cst_2 = arith.constant 0.000000e+00 : f32
    %6 = vector.broadcast %cst_2 : f32 to vector<1x256xf32>
    %7 = arith.maximumf %5, %6 : vector<1x256xf32>
    %8 = math.sqrt %7 : vector<1x256xf32>
    %c0_3 = arith.constant 0 : index
    %c0_4 = arith.constant 0 : index
    %9 = vector.load %arg2[%c0_3, %c0_4] : memref<10x1xf32, #tpu.memory_space<vmem>>, vector<10x1xf32>
    %10 = vector.broadcast %2 : vector<1x256xf32> to vector<10x256xf32>
    %11 = vector.broadcast %9 : vector<10x1xf32> to vector<10x256xf32>
    %12 = arith.mulf %10, %11 : vector<10x256xf32>
    %c0_5 = arith.constant 0 : index
    %c0_6 = arith.constant 0 : index
    %13 = vector.load %arg3[%c0_5, %c0_6] : memref<10x1xf32, #tpu.memory_space<vmem>>, vector<10x1xf32>
    %14 = vector.broadcast %8 : vector<1x256xf32> to vector<10x256xf32>
    %15 = vector.broadcast %13 : vector<10x1xf32> to vector<10x256xf32>
    %16 = arith.mulf %14, %15 : vector<10x256xf32>
    %17 = arith.addf %12, %16 : vector<10x256xf32>
    %cst_7 = arith.constant 1.000000e+00 : f32
    %18 = vector.broadcast %cst_7 : f32 to vector<10x256xf32>
    %19 = arith.addf %18, %17 : vector<10x256xf32>
    %cst_8 = arith.constant 0.000000e+00 : f32
    %20 = vector.broadcast %cst_8 : f32 to vector<10x256xf32>
    %21 = arith.maximumf %19, %20 : vector<10x256xf32>
    %22 = arith.mulf %21, %21 : vector<10x256xf32>
    %23 = arith.mulf %22, %22 : vector<10x256xf32>
    %24 = arith.mulf %23, %23 : vector<10x256xf32>
    %cst_9 = arith.constant 7.812500e-03 : f32
    %25 = vector.broadcast %cst_9 : f32 to vector<10x256xf32>
    %26 = arith.mulf %25, %24 : vector<10x256xf32>
    %c0_10 = arith.constant 0 : index
    %c0_11 = arith.constant 0 : index
    %27 = vector.load %arg4[%c0_10, %c0_11] : memref<10x256xf32, #tpu.memory_space<vmem>>, vector<10x256xf32>
    tpu.vector_store %arg4[%c0_10, %c0_11], %26 {strides = array<i32>} : memref<10x256xf32, #tpu.memory_space<vmem>>, vector<10x256xf32>,
    return
  }
  func.func @transform_0(%arg0: i32) -> (i32, i32) {
    %c0_i32 = arith.constant 0 : i32
    %c0_i32_0 = arith.constant 0 : i32
    return %c0_i32, %arg0 : i32, i32
  }
  func.func @transform_1(%arg0: i32) -> (i32, i32) {
    %c0_i32 = arith.constant 0 : i32
    %c0_i32_0 = arith.constant 0 : i32
    %c0_i32_1 = arith.constant 0 : i32
    return %c0_i32, %c0_i32_0 : i32, i32
  }
  func.func @transform_2(%arg0: i32) -> (i32, i32) {
    %c0_i32 = arith.constant 0 : i32
    %c0_i32_0 = arith.constant 0 : i32
    %c0_i32_1 = arith.constant 0 : i32
    return %c0_i32, %c0_i32_0 : i32, i32
  }
  func.func @transform_3(%arg0: i32) -> (i32, i32) {
    %c0_i32 = arith.constant 0 : i32
    %c0_i32_0 = arith.constant 0 : i32
    return %c0_i32, %arg0 : i32, i32
  }
}

</mosaic_0001>

<llo_original>
// kernel: tpu_custom_call.1
$region0: #{tpu_custom_call.1}
  #allocation0 [shape = 'u32[]', space=smem, size = 0x4, offset = 0x4, fixed_abs, tag = 'smem constant byte address 0x4 - core index']
  #allocation1 [shape = 'u32[144,128]{1,0:T(1,128)}', space=vmem, size = 0x12000, scoped, tag = 'internal scratch']
  %s0 = inlined_call_operand.vmem [shape: f32[1,256], index: 0, kind: input, shape index: {}]
  %s1 = inlined_call_operand.vmem [shape: f32[10,1], index: 1, kind: input, shape index: {}]
  %s2 = inlined_call_operand.vmem [shape: f32[10,1], index: 2, kind: input, shape index: {}]
  %s3 = inlined_call_operand.hbm [shape: f32[10,256], index: 3, kind: output, shape index: {}]
  %s4 = sld [smem:[#allocation0]]
  $region22: #{tpu_custom_call.1} parent=0
    _
  %s6 = ssub.s32 1, %s4
  %s7 = scalar_select 0, %s6, %s4
  $region1: #{tpu_custom_call.1} parent=0
    #allocation2 [shape = 'u8[16384]{0}', space=vmem, size = 0x4000, scoped, tag = 'output window, operand 0, single buffered']
    #allocation3 [shape = 's32[1]{0}', space=sflag, size = 0x4, scoped, tag = 'scoped memory for tpu_custom_call.1']
    %8 = vsyncpa [#allocation3], 0
    // Predicated region
    $region2: #{tpu_custom_call.1} parent=1 // pred_check
      _
    $region3: #{tpu_custom_call.1} parent=1 // pred_check_branch
      %10 = sbr.rel (0) target = $region5
    $region4: #{tpu_custom_call.1} parent=1 // pred_region
      _
    $region5: #{tpu_custom_call.1} parent=1 // pred_fallthru
      _
    // Predicated region
    $region6: #{tpu_custom_call.1} parent=1 // pred_check
      _
    $region7: #{tpu_custom_call.1} parent=1 // pred_check_branch
      %12 = sbr.rel (0) target = $region9
    $region8: #{tpu_custom_call.1} parent=1 // pred_region
      _
    $region9: #{tpu_custom_call.1} parent=1 // pred_fallthru
      _
    // Predicated region
    $region10: #{tpu_custom_call.1} parent=1 // pred_check
      _
    $region11: #{tpu_custom_call.1} parent=1 // pred_check_branch
      %14 = sbr.rel (0) target = $region13
    $region12: #{tpu_custom_call.1} parent=1 // pred_region
      _
    $region13: #{tpu_custom_call.1} parent=1 // pred_fallthru
      _
    %v15 = vld [vmem:[%s0] sm:$0x3]
    %v16 = vmul.f32 %v15, 0.95
    %v17 = vmul.f32 %v16, %v16
    %v18 = vsub.f32 1.0, %v17
    %v19 = vmax.f32 %v18, 0.0
    %v20 = vrsqrt.pop %v19
    %v21 = vmul.f32 %v19, %v20
    %vm22 = vcmp.eq.f32.partialorder %v19, inf
    %v23 = vsel %vm22, %v19, %v21
    %vm24 = vcmp.eq.f32.partialorder %v19, 0.0
    %v25 = vand.u32 %v19, 2147483648
    %v26 = vsel %vm24, %v25, %v23
    %v27 = vld [vmem:[%s1] sm:$0xff]
    %v28 = vld [vmem:[%s1 + $0x8] sm:$0x3]
    %v30 = vlaneseq
    %v31 = vshrl.u32 %v30, 7
    %v32 = vsub.s32 0, %v31
    %v33 = vrot.slane %v16, %v32
    %v34 = vlaneseq
    %v35 = vshrl.u32 %v34, 7
    %v36 = vsub.s32 1, %v35
    %v37 = vrot.slane %v16, %v36
    %41 = vset.pattern.permute.xlu0 0
    %42 = vperm.xlu0 %41, %v27
    %v43 = vpop.permute.xlu0 %42
    %46 = vset.pattern.permute.xlu0 0
    %47 = vperm.xlu0 %46, %v28
    %v48 = vpop.permute.xlu0 %47
    %v50 = vmul.f32 %v33, %v43
    %v51 = vmul.f32 %v37, %v43
    %v52 = vmul.f32 %v33, %v48
    %v53 = vmul.f32 %v37, %v48
    %v54 = vld [vmem:[%s2] sm:$0xff]
    %v55 = vld [vmem:[%s2 + $0x8] sm:$0x3]
    %v57 = vlaneseq
    %v58 = vshrl.u32 %v57, 7
    %v59 = vsub.s32 0, %v58
    %v60 = vrot.slane %v26, %v59
    %v61 = vlaneseq
    %v62 = vshrl.u32 %v61, 7
    %v63 = vsub.s32 1, %v62
    %v64 = vrot.slane %v26, %v63
    %68 = vset.pattern.permute.xlu0 0
    %69 = vperm.xlu0 %68, %v54
    %v70 = vpop.permute.xlu0 %69
    %73 = vset.pattern.permute.xlu0 0
    %74 = vperm.xlu0 %73, %v55
    %v75 = vpop.permute.xlu0 %74
    %v77 = vmul.f32 %v60, %v70
    %v78 = vmul.f32 %v64, %v70
    %v79 = vmul.f32 %v60, %v75
    %v80 = vmul.f32 %v64, %v75
    %v81 = vadd.f32 %v50, %v77
    %v82 = vadd.f32 %v51, %v78
    %v83 = vadd.f32 %v52, %v79
    %v84 = vadd.f32 %v53, %v80
    %v85 = vadd.f32 %v81, 1.0
    %v86 = vadd.f32 %v82, 1.0
    %v87 = vadd.f32 %v83, 1.0
    %v88 = vadd.f32 %v84, 1.0
    %v89 = vmax.f32 %v85, 0.0
    %v90 = vmax.f32 %v86, 0.0
    %v91 = vmax.f32 %v87, 0.0
    %v92 = vmax.f32 %v88, 0.0
    %v93 = vmul.f32 %v89, %v89
    %v94 = vmul.f32 %v90, %v90
    %v95 = vmul.f32 %v91, %v91
    %v96 = vmul.f32 %v92, %v92
    %v97 = vmul.f32 %v93, %v93
    %v98 = vmul.f32 %v94, %v94
    %v99 = vmul.f32 %v95, %v95
    %v100 = vmul.f32 %v96, %v96
    %v101 = vmul.f32 %v97, %v97
    %v102 = vmul.f32 %v98, %v98
    %v103 = vmul.f32 %v99, %v99
    %v104 = vmul.f32 %v100, %v100
    %v105 = vmul.f32 %v101, 0.0078125
    %v106 = vmul.f32 %v102, 0.0078125
    %v107 = vmul.f32 %v103, 0.0078125
    %v108 = vmul.f32 %v104, 0.0078125
    %109 = vst [vmem:[#allocation2] sm:$0xff] %v105
    %110 = vst [vmem:[#allocation2 + $0x8] sm:$0xff] %v106
    %111 = vst [vmem:[#allocation2 + $0x10] sm:$0x3] %v107
    %112 = vst [vmem:[#allocation2 + $0x18] sm:$0x3] %v108
    // Predicated region
    $region14: #{tpu_custom_call.1} parent=1 // pred_check
      _
    $region15: #{tpu_custom_call.1} parent=1 // pred_check_branch
      %114 = sbr.rel (0) target = $region17
    $region16: #{tpu_custom_call.1} parent=1 // pred_region
      %s116 = ssub.s32 512, 512
      %117 = vsyncadd [#allocation3], %s116
      %s118 = sshll.u32 [#allocation2], 4
      %s119 = int_to_ptr.vmem [resolvable:$true] %s118
      %124 = dma.vmem_to_hbm [thread:$0]  %s119, 512, %s3, [#allocation3], 256, 256, 16
    $region17: #{tpu_custom_call.1} parent=1 // pred_fallthru
      _
    // Predicated region
    $region18: #{tpu_custom_call.1} parent=1 // pred_check
      _
    $region19: #{tpu_custom_call.1} parent=1 // pred_check_branch
      %126 = sbr.rel (0) target = $region21
    $region20: #{tpu_custom_call.1} parent=1 // pred_region
      %127 = dma.done [#allocation3], 512
    $region21: #{tpu_custom_call.1} parent=1 // pred_fallthru
      _
    %128 = vsyncpa [#allocation3], 1

</llo_original>
